<compile_context>
chip_gen: v5e
topology: v5e:2x2
jax: 0.10.0
libtpu: 0.0.40
codegen_flags: <defaults>
</compile_context>

<pallas_src>
import jax
import jax.numpy as jnp
from jax import lax
from jax.experimental import pallas as pl
from jax.experimental.pallas import tpu as pltpu


def _round_up(n, m):
    return ((n + m - 1) // m) * m


def _projection_kernel(x_ref, w_ref, b_ref, o_ref):
    # x_ref: (tn, S)      pixels x input-channels (leading batch dim squeezed)
    # w_ref: (C_out, S)   conv weight (resident, ~1 KiB)
    # b_ref: (C_out, 1)   bias
    # o_ref: (C_out, tn)  transposed output tile -- lane-dense store
    #
    # out^T = W @ x^T.  dot_general contracts the last dim of BOTH operands
    # (the attention "dot(a, b, trans_b=True)" pattern), which Mosaic feeds
    # straight into the MXU -- no XLU transpose of the lane-padded x tile.
    acc = lax.dot_general(
        w_ref[...], x_ref[...],
        dimension_numbers=(((1,), (1,)), ((), ())),
        preferred_element_type=jnp.float32)
    o_ref[...] = (acc + b_ref[...]).astype(o_ref.dtype)


def projection_forward(x, weight, bias, *, tn=None):
    """
    x      : (B, n_c, H, W, S) float32, n_c must be 1
    weight : (C_out, S, 1, 1)  float32  (nn.Conv2d weight layout)
    bias   : (C_out,)          float32
    returns: (B, C_out, H, W)  float32
    """
    B, n_c, H, W, S = x.shape
    C_out = weight.shape[0]
    assert n_c == 1, "Projection assumes n_c == 1 (Conv2d in_channels == n_slices)"
    assert weight.shape == (C_out, S, 1, 1)

    HW = H * W

    if tn is None:
        # Mem-bound kernel: large pixel tiles amortize the ~0.35 us/step grid
        # overhead (>= ~70-80% of HBM roofline on v6e/v7x at 16K pixels).
        tn = 16384
        # Keep >= 2 pixel tiles when B == 1 so v7x's second TensorCore has
        # work to shard onto.
        if B == 1 and HW > 2 * 128:
            tn = min(tn, _round_up(pl.cdiv(HW, 2), 128))
    # Lane-dense tile (multiple of 128), never bigger than the (128-rounded)
    # pixel count so tiny demo shapes don't over-allocate.
    tn = _round_up(min(tn, _round_up(HW, 128)), 128)

    n_tiles = pl.cdiv(HW, tn)   # ragged final tile handled by Pallas masking

    # (B, 1, H, W, S) -> (B, HW, S): pure reshape (n_c == 1), no transpose,
    # no extra HBM round trip.  Equivalent to the module's Rearrange for n_c=1.
    x2d = x.reshape(B, HW, S)
    w_mat = weight.reshape(C_out, S)      # (C_out, S)
    b_mat = bias.reshape(C_out, 1)        # (C_out, 1)

    # VMEM budget against the real lane-padded layouts (double-buffered):
    #   input  (tn, S) f32: minor dim padded to 128 lanes -> tn*512 B / buffer
    #   output (C_out, tn) f32:                              C_out_pad*tn*4 B / buffer
    c_out_pad = _round_up(C_out, 8)
    vmem_budget = 2 * (tn * 512 + c_out_pad * tn * 4) + (4 << 20)
    vmem_budget = min(max(vmem_budget, 16 << 20), 48 << 20)

    out = pl.pallas_call(
        _projection_kernel,
        out_shape=jax.ShapeDtypeStruct((B, C_out, HW), x.dtype),
        grid_spec=pl.GridSpec(
            grid=(B, n_tiles),
            in_specs=[
                # (None, tn, S): batch dim squeezed; S last == full array dim.
                pl.BlockSpec((None, tn, S), lambda b, j: (b, j, 0)),
                # Tiny weight/bias stay resident (constant index maps).
                pl.BlockSpec((C_out, S), lambda b, j: (0, 0)),
                pl.BlockSpec((C_out, 1), lambda b, j: (0, 0)),
            ],
            # Lane-dense (C_out, tn) output blocks into an NCHW-native slab.
            out_specs=pl.BlockSpec((None, C_out, tn), lambda b, j: (b, 0, j)),
        ),
        compiler_params=pltpu.CompilerParams(
            # Both grid axes index independent output tiles -> megacore-able.
            dimension_semantics=("parallel", "parallel"),
            vmem_limit_bytes=vmem_budget),
    )(x2d, w_mat, b_mat)

    # (B, C_out, HW) -> (B, C_out, H, W): free reshape, no pad to slice off.
    return out.reshape(B, C_out, H, W)


if __name__ == "__main__":
    # Small shapes consistent with the module (n_c == 1).
    B, n_c, H, W = 2, 1, 16, 16
    n_slices = 8              # S  : conv input channels
    n_output_channels = 32    # C_out

    key = jax.random.PRNGKey(0)
    kx, kw, kb = jax.random.split(key, 3)

    x = jax.random.normal(kx, (B, n_c, H, W, n_slices), dtype=jnp.float32)

    # Deterministic Conv2d(n_slices, n_output_channels, 1) parameters
    # (uniform in [-1/sqrt(fan_in), 1/sqrt(fan_in)] like PyTorch's default).
    fan_in = n_slices * 1 * 1
    bound = 1.0 / (fan_in ** 0.5)
    weight = jax.random.uniform(
        kw, (n_output_channels, n_slices, 1, 1),
        minval=-bound, maxval=bound, dtype=jnp.float32)
    bias = jax.random.uniform(
        kb, (n_output_channels,), minval=-bound, maxval=bound,
        dtype=jnp.float32)

    out = projection_forward(x, weight, bias)
    out = jax.block_until_ready(out)

    # Pure-JAX reference (same math as the PyTorch module).
    x_r = jnp.transpose(x, (0, 4, 1, 2, 3)).reshape(B, n_slices * n_c, H, W)
    ref = jnp.einsum("bshw,cs->bchw", x_r,
                     weight.reshape(n_output_channels, n_slices))
    ref = ref + bias[None, :, None, None]

    assert out.shape == (B, n_output_channels, H, W)
    assert jnp.allclose(out, ref, atol=1e-5, rtol=1e-5)

    print("KERNEL_OK")
</pallas_src>

<mosaic_0001>
module attributes {stable_mosaic.version = 11 : i64} {
  func.func @_projection_kernel(%arg0: i32, %arg1: i32, %arg2: memref<1x256x8xf32, #tpu.memory_space<vmem>>, %arg3: memref<32x8xf32, #tpu.memory_space<vmem>>, %arg4: memref<32x1xf32, #tpu.memory_space<vmem>>, %arg5: memref<1x32x256xf32, #tpu.memory_space<vmem>>) attributes {dimension_semantics = [#tpu.dimension_semantics<parallel>, #tpu.dimension_semantics<parallel>], iteration_bounds = array<i64: 2, 1>, scalar_prefetch = 0 : i64, scratch_operands = 0 : i64, tpu.core_type = #tpu.core_type<tc>, window_params = [{transform_indices = @transform_0, window_bounds = array<i64: 1, 256, 8>}, {pipeline_mode = #tpu.pipeline_mode<synchronous>, transform_indices = @transform_1, window_bounds = array<i64: 32, 8>}, {pipeline_mode = #tpu.pipeline_mode<synchronous>, transform_indices = @transform_2, window_bounds = array<i64: 32, 1>}, {transform_indices = @transform_3, window_bounds = array<i64: 1, 32, 256>}]} {
    %c0 = arith.constant 0 : index
    %c0_0 = arith.constant 0 : index
    %0 = vector.load %arg3[%c0, %c0_0] : memref<32x8xf32, #tpu.memory_space<vmem>>, vector<32x8xf32>
    %c0_1 = arith.constant 0 : index
    %c0_2 = arith.constant 0 : index
    %c0_3 = arith.constant 0 : index
    %1 = vector.load %arg2[%c0_1, %c0_2, %c0_3] : memref<1x256x8xf32, #tpu.memory_space<vmem>>, vector<1x256x8xf32>
    %2 = vector.shape_cast %1 : vector<1x256x8xf32> to vector<256x8xf32>
    %cst = arith.constant dense<0.000000e+00> : vector<32x256xf32>
    %3 = tpu.matmul %0, %2, %cst {dimension_numbers = #tpu.dot_dimension_numbers<[1], [1], [0], [0], [0, 0, 1, 0], [], []>} : vector<32x8xf32>, vector<256x8xf32>, vector<32x256xf32> -> vector<32x256xf32>
    %c0_4 = arith.constant 0 : index
    %c0_5 = arith.constant 0 : index
    %4 = vector.load %arg4[%c0_4, %c0_5] : memref<32x1xf32, #tpu.memory_space<vmem>>, vector<32x1xf32>
    %5 = vector.broadcast %4 : vector<32x1xf32> to vector<32x256xf32>
    %6 = arith.addf %3, %5 : vector<32x256xf32>
    %c0_6 = arith.constant 0 : index
    %c0_7 = arith.constant 0 : index
    %c0_8 = arith.constant 0 : index
    %7 = vector.load %arg5[%c0_6, %c0_7, %c0_8] : memref<1x32x256xf32, #tpu.memory_space<vmem>>, vector<1x32x256xf32>
    %8 = vector.shape_cast %7 : vector<1x32x256xf32> to vector<32x256xf32>
    %9 = vector.shape_cast %6 : vector<32x256xf32> to vector<1x32x256xf32>
    tpu.vector_store %arg5[%c0_6, %c0_7, %c0_8], %9 {strides = array<i32>} : memref<1x32x256xf32, #tpu.memory_space<vmem>>, vector<1x32x256xf32>,
    return
  }
  func.func @transform_0(%arg0: i32, %arg1: i32) -> (i32, i32, i32) {
    %c0_i32 = arith.constant 0 : i32
    %c0_i32_0 = arith.constant 0 : i32
    return %arg0, %arg1, %c0_i32 : i32, i32, i32
  }
  func.func @transform_1(%arg0: i32, %arg1: i32) -> (i32, i32) {
    %c0_i32 = arith.constant 0 : i32
    %c0_i32_0 = arith.constant 0 : i32
    %c0_i32_1 = arith.constant 0 : i32
    return %c0_i32, %c0_i32_0 : i32, i32
  }
  func.func @transform_2(%arg0: i32, %arg1: i32) -> (i32, i32) {
    %c0_i32 = arith.constant 0 : i32
    %c0_i32_0 = arith.constant 0 : i32
    %c0_i32_1 = arith.constant 0 : i32
    return %c0_i32, %c0_i32_0 : i32, i32
  }
  func.func @transform_3(%arg0: i32, %arg1: i32) -> (i32, i32, i32) {
    %c0_i32 = arith.constant 0 : i32
    %c0_i32_0 = arith.constant 0 : i32
    return %arg0, %c0_i32, %arg1 : i32, i32, i32
  }
}

</mosaic_0001>

<llo_original>
// kernel: tpu_custom_call.1
$region0: #{tpu_custom_call.1}
  #allocation0 [shape = 'u32[]', space=smem, size = 0x4, offset = 0x4, fixed_abs, tag = 'smem constant byte address 0x4 - core index']
  #allocation1 [shape = 'u32[72,128]{1,0:T(1,128)}', space=vmem, size = 0x9000, scoped, tag = 'internal scratch']
  %s0 = inlined_call_operand.vmem [shape: f32[2,256,8], index: 0, kind: input, shape index: {}]
  %s1 = inlined_call_operand.vmem [shape: f32[32,8], index: 1, kind: input, shape index: {}]
  %s2 = inlined_call_operand.vmem [shape: f32[32,1], index: 2, kind: input, shape index: {}]
  %s3 = inlined_call_operand.hbm [shape: f32[2,32,256], index: 3, kind: output, shape index: {}]
  %s4 = sld [smem:[#allocation0]]
  $region45: #{tpu_custom_call.1} parent=0
    _
  %s6 = ssub.s32 1, %s4
  %s7 = scalar_select 0, %s6, %s4
  $region1: #{tpu_custom_call.1} parent=0
    #allocation2 [shape = 'u8[65536]{0}', space=vmem, size = 0x10000, scoped, tag = 'output window, operand 0']
    #allocation3 [shape = 's32[2]{0}', space=sflag, size = 0x8, scoped, tag = 'scoped memory for tpu_custom_call.1']
    %8 = vsyncpa [#allocation3], 0
    %s9 = scalar_lea.sflag [#allocation3], 1
    %10 = vsyncpa %s9, 0
    loop: start=0, step=1, limit=4
    $region2: #{tpu_custom_call.1} parent=1 // loop_pre_header
      _
    $region3: #{tpu_custom_call.1} parent=1 // loop_header
      %s12 = sphi 0, %s16
      %p13 = scmp.ge.s32.totalorder %s12, 4
      %s19 = sphi 0, %s31
      %s20 = sphi 0, %s27
      %s21 = sphi 0, %s19
      %s22 = sphi 0, %s20
      %s23 = sphi 0, %s21
      %s24 = sphi 0, %s22
      %s36 = sphi 0, %s38
      %s39 = sphi 0, %s36
      %s40 = sphi 0, %s39
      %s56 = sphi 0, %s40
      %s60 = sphi 0, %s60
      %s62 = sphi 0, %s60
      %s63 = sphi 0, %s62
      %s77 = sphi 0, %s63
      %s81 = sphi 0, %s81
      %s83 = sphi 0, %s81
      %s84 = sphi 0, %s83
      %s98 = sphi 0, %s84
      %s106 = sphi 0, %s108
      %s109 = sphi 0, %s106
      %s110 = sphi 0, %s109
      %s126 = sphi 0, %s110
    $region4: #{tpu_custom_call.1} parent=1 // loop_header_branch
      %15 = sbr.rel (%p13) target = $region8
    $region5: #{tpu_custom_call.1} parent=1 // loop_body
      %s17 = ssub.s32 %s12, 1
      %s18 = ssub.s32 %s12, 2
      %s25 = sadd.s32 1, %s20
      %p26 = scmp.ge.s32.totalorder %s25, 1
      %s27 = scalar_select %p26, 0, %s25
      %s28 = sadd.s32 1, %s19
      %s29 = scalar_select %p26, %s28, %s19
      %p30 = scmp.ge.s32.totalorder %s29, 2
      %s31 = scalar_select %p30, 0, %s29
      %s32 = ssub.s32 %s19, %s31
      %s33 = ssub.s32 %s20, %s27
      %s34 = sor.u32 %s32, %s33
      %p35 = scmp.eq.s32.totalorder %s34, 0
      %s37 = sadd.s32 %s36, 1
      %s38 = scalar_select %p35, %s36, %s37
      %p41 = pneg %p35
      %p42 = scmp.eq.s32.totalorder %s12, 1
      %p43 = por %p41, %p42
      %p44 = scmp.ne.s32.totalorder %s36, %s39
      %p45 = scmp.eq.s32.totalorder %s12, 0
      %p46 = por %p44, %p45
      %p47 = scmp.ne.s32.totalorder %s36, %s39
      %p48 = scmp.eq.s32.totalorder %s17, 1
      %p49 = por %p47, %p48
      %p50 = scmp.ne.s32.totalorder %s39, %s40
      %p51 = scmp.eq.s32.totalorder %s17, 0
      %p52 = por %p50, %p51
      %p53 = scmp.ne.s32.totalorder %s39, %s40
      %p54 = scmp.eq.s32.totalorder %s18, 1
      %p55 = por %p53, %p54
      %p57 = scmp.ne.s32.totalorder %s40, %s56
      %p58 = scmp.eq.s32.totalorder %s18, 0
      %p59 = por %p57, %p58
      %s61 = sadd.s32 %s60, 1
      %p64 = scmp.eq.s32.totalorder %s12, 1
      %p65 = scmp.ne.s32.totalorder %s60, %s62
      %p66 = scmp.eq.s32.totalorder %s12, 0
      %p67 = por %p65, %p66
      %p68 = scmp.ne.s32.totalorder %s60, %s62
      %p69 = scmp.eq.s32.totalorder %s17, 1
      %p70 = por %p68, %p69
      %p71 = scmp.ne.s32.totalorder %s62, %s63
      %p72 = scmp.eq.s32.totalorder %s17, 0
      %p73 = por %p71, %p72
      %p74 = scmp.ne.s32.totalorder %s62, %s63
      %p75 = scmp.eq.s32.totalorder %s18, 1
      %p76 = por %p74, %p75
      %p78 = scmp.ne.s32.totalorder %s63, %s77
      %p79 = scmp.eq.s32.totalorder %s18, 0
      %p80 = por %p78, %p79
      %s82 = sadd.s32 %s81, 1
      %p85 = scmp.eq.s32.totalorder %s12, 1
      %p86 = scmp.ne.s32.totalorder %s81, %s83
      %p87 = scmp.eq.s32.totalorder %s12, 0
      %p88 = por %p86, %p87
      %p89 = scmp.ne.s32.totalorder %s81, %s83
      %p90 = scmp.eq.s32.totalorder %s17, 1
      %p91 = por %p89, %p90
      %p92 = scmp.ne.s32.totalorder %s83, %s84
      %p93 = scmp.eq.s32.totalorder %s17, 0
      %p94 = por %p92, %p93
      %p95 = scmp.ne.s32.totalorder %s83, %s84
      %p96 = scmp.eq.s32.totalorder %s18, 1
      %p97 = por %p95, %p96
      %p99 = scmp.ne.s32.totalorder %s84, %s98
      %p100 = scmp.eq.s32.totalorder %s18, 0
      %p101 = por %p99, %p100
      %s102 = ssub.s32 %s19, %s31
      %s103 = ssub.s32 %s20, %s27
      %s104 = sor.u32 %s102, %s103
      %p105 = scmp.eq.s32.totalorder %s104, 0
      %s107 = sadd.s32 %s106, 1
      %s108 = scalar_select %p105, %s106, %s107
      %p111 = pneg %p105
      %p112 = scmp.eq.s32.totalorder %s12, 1
      %p113 = por %p111, %p112
      %p114 = scmp.ne.s32.totalorder %s106, %s109
      %p115 = scmp.eq.s32.totalorder %s12, 0
      %p116 = por %p114, %p115
      %p117 = scmp.ne.s32.totalorder %s106, %s109
      %p118 = scmp.eq.s32.totalorder %s17, 1
      %p119 = por %p117, %p118
      %p120 = scmp.ne.s32.totalorder %s109, %s110
      %p121 = scmp.eq.s32.totalorder %s17, 0
      %p122 = por %p120, %p121
      %p123 = scmp.ne.s32.totalorder %s109, %s110
      %p124 = scmp.eq.s32.totalorder %s18, 1
      %p125 = por %p123, %p124
      %p127 = scmp.ne.s32.totalorder %s110, %s126
      %p128 = scmp.eq.s32.totalorder %s18, 0
      %p129 = por %p127, %p128
      %p130 = scmp.le.s32.totalorder 1, %s12
      %p131 = scmp.lt.s32.totalorder %s12, 3
      %p132 = pnand %p130, %p131
      %p133 = pneg %p132
      // Predicated region
      $region9: #{tpu_custom_call.1} parent=5 // pred_check
        _
      $region10: #{tpu_custom_call.1} parent=5 // pred_check_branch
        %135 = sbr.rel (%p132) target = $region12
      $region11: #{tpu_custom_call.1} parent=5 // pred_region
        %s136 = ssub.s32 %s12, 1
        // Predicated region
        $region13: #{tpu_custom_call.1} parent=11 // pred_check
          %p137 = pneg %p73
        $region14: #{tpu_custom_call.1} parent=11 // pred_check_branch
          %139 = sbr.rel (%p137) target = $region16
        $region15: #{tpu_custom_call.1} parent=11 // pred_region
          _
        $region16: #{tpu_custom_call.1} parent=11 // pred_fallthru
          _
        // Predicated region
        $region17: #{tpu_custom_call.1} parent=11 // pred_check
          %p140 = pneg %p94
        $region18: #{tpu_custom_call.1} parent=11 // pred_check_branch
          %142 = sbr.rel (%p140) target = $region20
        $region19: #{tpu_custom_call.1} parent=11 // pred_region
          _
        $region20: #{tpu_custom_call.1} parent=11 // pred_fallthru
          _
      $region12: #{tpu_custom_call.1} parent=5 // pred_fallthru
        _
      %p143 = scmp.lt.s32.totalorder %s12, 2
      // Predicated region
      $region21: #{tpu_custom_call.1} parent=5 // pred_check
        %p144 = pneg %p143
      $region22: #{tpu_custom_call.1} parent=5 // pred_check_branch
        %146 = sbr.rel (%p144) target = $region24
      $region23: #{tpu_custom_call.1} parent=5 // pred_region
        // Predicated region
        $region25: #{tpu_custom_call.1} parent=23 // pred_check
          %p147 = pneg %p46
        $region26: #{tpu_custom_call.1} parent=23 // pred_check_branch
          %149 = sbr.rel (%p147) target = $region28
        $region27: #{tpu_custom_call.1} parent=23 // pred_region
          %s150 = smul.u32 32, %s20
          %p151 = scmp.lt.s32.totalorder %s19, 1
          %s152 = scalar_select %p151, %s19, 1
          %p153 = scmp.lt.s32.totalorder %s150, 31
          %s154 = scalar_select %p153, %s150, 31
          %s155 = smul.addr %s152, 32
          %s156 = sadd.s32 %s154, %s155
          %s157 = smul.addr %s156, 8
          %s158 = scalar_lea.vmem %s0, %s157
          %s159 = smul.u32 32, %s20
        $region28: #{tpu_custom_call.1} parent=23 // pred_fallthru
          _
      $region24: #{tpu_custom_call.1} parent=5 // pred_fallthru
        _
      %p160 = scmp.le.s32.totalorder 1, %s12
      %p161 = scmp.lt.s32.totalorder %s12, 3
      %p162 = pnand %p160, %p161
      %p163 = pneg %p162
      // Predicated region
      $region29: #{tpu_custom_call.1} parent=5 // pred_check
        _
      $region30: #{tpu_custom_call.1} parent=5 // pred_check_branch
        %165 = sbr.rel (%p162) target = $region32
      $region31: #{tpu_custom_call.1} parent=5 // pred_region
        %s166 = ssub.s32 %s12, 1
        %s167 = smul.u32 32, %s22
        %p168 = scmp.lt.s32.totalorder %s21, 1
        %s169 = scalar_select %p168, %s21, 1
        %p170 = scmp.lt.s32.totalorder %s167, 31
        %s171 = scalar_select %p170, %s167, 31
        %s172 = smul.addr %s169, 32
        %s173 = sadd.s32 %s171, %s172
        %s174 = smul.addr %s173, 8
        %s175 = scalar_lea.vmem %s0, %s174
        %p176 = pneg %p52
        %p177 = pneg %p49
        %p178 = pneg %p73
        %p179 = pneg %p70
        %p180 = pneg %p94
        %p181 = pneg %p91
        %p182 = pneg %p122
        %p183 = pneg %p119
        %s184 = sand.u32 %s109, 1
        %s185 = scalar_lea.sflag [#allocation3], %s184
        %s186 = sand.u32 %s109, 1
        %s187 = smul.addr %s186, 64
        %s188 = scalar_lea.vmem [#allocation2], %s187
        %s189 = smul.u32 32, %s22
        %p190 = scmp.lt.s32.totalorder %s21, 1
        %s191 = scalar_select %p190, %s21, 1
        %p192 = scmp.lt.s32.totalorder %s189, 31
        %s193 = scalar_select %p192, %s189, 31
        %s194 = smul.addr %s191, 32
        %s195 = sadd.s32 %s193, %s194
        %s196 = smul.addr %s195, 8
        %s197 = scalar_lea.vmem %s0, %s196
        %s198 = smul.u32 32, %s22
        %s199 = smul.u32 2, %s22
        %v200 = vld [vmem:[%s1] sm:$0xff]
        %v201 = vld [vmem:[%s1 + $0x8] sm:$0xff]
        %v202 = vld [vmem:[%s1 + $0x10] sm:$0xff]
        %v203 = vld [vmem:[%s1 + $0x18] sm:$0xff]
        %v204 = vld [vmem:[%s197] sm:$0xff]
        %v205 = vld [vmem:[%s197 + $0x8] sm:$0xff]
        %v206 = vld [vmem:[%s197 + $0x10] sm:$0xff]
        %v207 = vld [vmem:[%s197 + $0x18] sm:$0xff]
        %v208 = vld [vmem:[%s197 + $0x20] sm:$0xff]
        %v209 = vld [vmem:[%s197 + $0x28] sm:$0xff]
        %v210 = vld [vmem:[%s197 + $0x30] sm:$0xff]
        %v211 = vld [vmem:[%s197 + $0x38] sm:$0xff]
        %v212 = vld [vmem:[%s197 + $0x40] sm:$0xff]
        %v213 = vld [vmem:[%s197 + $0x48] sm:$0xff]
        %v214 = vld [vmem:[%s197 + $0x50] sm:$0xff]
        %v215 = vld [vmem:[%s197 + $0x58] sm:$0xff]
        %v216 = vld [vmem:[%s197 + $0x60] sm:$0xff]
        %v217 = vld [vmem:[%s197 + $0x68] sm:$0xff]
        %v218 = vld [vmem:[%s197 + $0x70] sm:$0xff]
        %v219 = vld [vmem:[%s197 + $0x78] sm:$0xff]
        %v220 = vld [vmem:[%s197 + $0x80] sm:$0xff]
        %v221 = vld [vmem:[%s197 + $0x88] sm:$0xff]
        %v222 = vld [vmem:[%s197 + $0x90] sm:$0xff]
        %v223 = vld [vmem:[%s197 + $0x98] sm:$0xff]
        %v224 = vld [vmem:[%s197 + $0xa0] sm:$0xff]
        %v225 = vld [vmem:[%s197 + $0xa8] sm:$0xff]
        %v226 = vld [vmem:[%s197 + $0xb0] sm:$0xff]
        %v227 = vld [vmem:[%s197 + $0xb8] sm:$0xff]
        %v228 = vld [vmem:[%s197 + $0xc0] sm:$0xff]
        %v229 = vld [vmem:[%s197 + $0xc8] sm:$0xff]
        %v230 = vld [vmem:[%s197 + $0xd0] sm:$0xff]
        %v231 = vld [vmem:[%s197 + $0xd8] sm:$0xff]
        %v232 = vld [vmem:[%s197 + $0xe0] sm:$0xff]
        %v233 = vld [vmem:[%s197 + $0xe8] sm:$0xff]
        %v234 = vld [vmem:[%s197 + $0xf0] sm:$0xff]
        %v235 = vld [vmem:[%s197 + $0xf8] sm:$0xff]
        %v236 = vld [vmem:[%s2] sm:$0xff]
        %v237 = vld [vmem:[%s2 + $0x8] sm:$0xff]
        %v238 = vld [vmem:[%s2 + $0x10] sm:$0xff]
        %v239 = vld [vmem:[%s2 + $0x18] sm:$0xff]
        %241 = vset.pattern.permute.xlu0 0
        %242 = vperm.xlu0 %241, %v236
        %v243 = vpop.permute.xlu0 %242
        %246 = vset.pattern.permute.xlu0 0
        %247 = vperm.xlu0 %246, %v237
        %v248 = vpop.permute.xlu0 %247
        %251 = vset.pattern.permute.xlu0 0
        %252 = vperm.xlu0 %251, %v238
        %v253 = vpop.permute.xlu0 %252
        %256 = vset.pattern.permute.xlu0 0
        %257 = vperm.xlu0 %256, %v239
        %v258 = vpop.permute.xlu0 %257
        %vm260 = vcmask 64512
        %v262 = vsel %vm260, %v200, 0
        %v265 = vsel %vm260, %v201, 0
        %v268 = vsel %vm260, %v202, 0
        %v271 = vsel %vm260, %v203, 0
        %v274 = vsel %vm260, %v204, 0
        %v277 = vsel %vm260, %v205, 0
        %v280 = vsel %vm260, %v206, 0
        %v283 = vsel %vm260, %v207, 0
        %v286 = vsel %vm260, %v208, 0
        %v289 = vsel %vm260, %v209, 0
        %v292 = vsel %vm260, %v210, 0
        %v295 = vsel %vm260, %v211, 0
        %v298 = vsel %vm260, %v212, 0
        %v301 = vsel %vm260, %v213, 0
        %v304 = vsel %vm260, %v214, 0
        %v307 = vsel %vm260, %v215, 0
        %v310 = vsel %vm260, %v216, 0
        %v313 = vsel %vm260, %v217, 0
        %v316 = vsel %vm260, %v218, 0
        %v319 = vsel %vm260, %v219, 0
        %v322 = vsel %vm260, %v220, 0
        %v325 = vsel %vm260, %v221, 0
        %v328 = vsel %vm260, %v222, 0
        %v331 = vsel %vm260, %v223, 0
        %v334 = vsel %vm260, %v224, 0
        %v337 = vsel %vm260, %v225, 0
        %v340 = vsel %vm260, %v226, 0
        %v343 = vsel %vm260, %v227, 0
        %v346 = vsel %vm260, %v228, 0
        %v349 = vsel %vm260, %v229, 0
        %v352 = vsel %vm260, %v230, 0
        %v355 = vsel %vm260, %v231, 0
        %v358 = vsel %vm260, %v232, 0
        %v361 = vsel %vm260, %v233, 0
        %v364 = vsel %vm260, %v234, 0
        %v367 = vsel %vm260, %v235, 0
        %369 = vmatpush.xpose.msra.mxu0 %v319
        %370 = vmatpush.xpose.msra.mxu0 %v316
        %371 = vmatpush.xpose.msra.mxu0 %v313
        %372 = vmatpush.xpose.msra.mxu0 %v310
        %373 = vmatpush.xpose.msra.mxu0 %v307
        %374 = vmatpush.xpose.msra.mxu0 %v304
        %375 = vmatpush.xpose.msra.mxu0 %v301
        %376 = vmatpush.xpose.msra.mxu0 %v298
        %377 = vmatpush.xpose.msra.mxu0 %v295
        %378 = vmatpush.xpose.msra.mxu0 %v292
        %379 = vmatpush.xpose.msra.mxu0 %v289
        %380 = vmatpush.xpose.msra.mxu0 %v286
        %381 = vmatpush.xpose.msra.mxu0 %v283
        %382 = vmatpush.xpose.msra.mxu0 %v280
        %383 = vmatpush.xpose.msra.mxu0 %v277
        %384 = vmatpush.xpose.msra.mxu0 %v274
        %385 = vmatmul.f32.gmra.mxu0 %v262
        %v386 = vpop.f32.mrf.mxu0
        %v387 = vadd.f32 %v243, %v386
        %388 = vmatmul.f32.gmra.mxu0 %v265
        %v389 = vpop.f32.mrf.mxu0
        %v390 = vadd.f32 %v248, %v389
        %391 = vmatmul.f32.gmra.mxu0 %v268
        %v392 = vpop.f32.mrf.mxu0
        %v393 = vadd.f32 %v253, %v392
        %394 = vmatmul.f32.gmra.mxu0 %v271
        %v395 = vpop.f32.mrf.mxu0
        %v396 = vadd.f32 %v258, %v395
        %397 = vdwg.mxu0
        %398 = vmatpush.xpose.msra.mxu0 %v367
        %399 = vmatpush.xpose.msra.mxu0 %v364
        %400 = vmatpush.xpose.msra.mxu0 %v361
        %401 = vmatpush.xpose.msra.mxu0 %v358
        %402 = vmatpush.xpose.msra.mxu0 %v355
        %403 = vmatpush.xpose.msra.mxu0 %v352
        %404 = vmatpush.xpose.msra.mxu0 %v349
        %405 = vmatpush.xpose.msra.mxu0 %v346
        %406 = vmatpush.xpose.msra.mxu0 %v343
        %407 = vmatpush.xpose.msra.mxu0 %v340
        %408 = vmatpush.xpose.msra.mxu0 %v337
        %409 = vmatpush.xpose.msra.mxu0 %v334
        %410 = vmatpush.xpose.msra.mxu0 %v331
        %411 = vmatpush.xpose.msra.mxu0 %v328
        %412 = vmatpush.xpose.msra.mxu0 %v325
        %413 = vmatpush.xpose.msra.mxu0 %v322
        %414 = vmatmul.f32.gmra.mxu0 %v262
        %v415 = vpop.f32.mrf.mxu0
        %v416 = vadd.f32 %v243, %v415
        %417 = vmatmul.f32.gmra.mxu0 %v265
        %v418 = vpop.f32.mrf.mxu0
        %v419 = vadd.f32 %v248, %v418
        %420 = vmatmul.f32.gmra.mxu0 %v268
        %v421 = vpop.f32.mrf.mxu0
        %v422 = vadd.f32 %v253, %v421
        %423 = vmatmul.f32.gmra.mxu0 %v271
        %v424 = vpop.f32.mrf.mxu0
        %v425 = vadd.f32 %v258, %v424
        %426 = vdwg.mxu0
        %427 = vst [vmem:[%s188] sm:$0xff] %v387
        %428 = vst [vmem:[%s188 + $0x8] sm:$0xff] %v416
        %429 = vst [vmem:[%s188 + $0x10] sm:$0xff] %v390
        %430 = vst [vmem:[%s188 + $0x18] sm:$0xff] %v419
        %431 = vst [vmem:[%s188 + $0x20] sm:$0xff] %v393
        %432 = vst [vmem:[%s188 + $0x28] sm:$0xff] %v422
        %433 = vst [vmem:[%s188 + $0x30] sm:$0xff] %v396
        %434 = vst [vmem:[%s188 + $0x38] sm:$0xff] %v425
        %s435 = sand.u32 %s109, 1
        %s436 = scalar_lea.sflag [#allocation3], %s435
        %s437 = sand.u32 %s109, 1
        %s438 = smul.addr %s437, 64
        %s439 = scalar_lea.vmem [#allocation2], %s438
        // Predicated region
        $region33: #{tpu_custom_call.1} parent=31 // pred_check
          %p440 = pneg %p119
        $region34: #{tpu_custom_call.1} parent=31 // pred_check_branch
          %442 = sbr.rel (%p440) target = $region36
        $region35: #{tpu_custom_call.1} parent=31 // pred_region
          %s443 = smul.u32 2, %s22
          %445 = vsyncadd %s436, 0
          %s446 = smul.addr %s21, 8
          %s447 = sadd.s32 %s443, %s446
          %s448 = smul.addr %s447, 8
          %s449 = scalar_lea.hbm %s3, %s448
          %s450 = sshll.u32 %s439, 4
          %s451 = int_to_ptr.vmem [resolvable:$true] %s450
          %s452 = sshll.u32 %s449, 4
          %s453 = int_to_ptr.hbm [resolvable:$true] %s452
          %458 = dma.vmem_to_hbm [thread:$0]  %s451, 1024, %s453, %s436, 256, 256, 16
        $region36: #{tpu_custom_call.1} parent=31 // pred_fallthru
          _
      $region32: #{tpu_custom_call.1} parent=5 // pred_fallthru
        _
      %p459 = scmp.le.s32.totalorder 2, %s12
      // Predicated region
      $region37: #{tpu_custom_call.1} parent=5 // pred_check
        %p460 = pneg %p459
      $region38: #{tpu_custom_call.1} parent=5 // pred_check_branch
        %462 = sbr.rel (%p460) target = $region40
      $region39: #{tpu_custom_call.1} parent=5 // pred_region
        %s463 = ssub.s32 %s12, 2
        // Predicated region
        $region41: #{tpu_custom_call.1} parent=39 // pred_check
          %p464 = pneg %p125
        $region42: #{tpu_custom_call.1} parent=39 // pred_check_branch
          %466 = sbr.rel (%p464) target = $region44
        $region43: #{tpu_custom_call.1} parent=39 // pred_region
          %s467 = sand.u32 %s110, 1
          %s468 = scalar_lea.sflag [#allocation3], %s467
          %s469 = sand.u32 %s110, 1
          %s470 = smul.addr %s469, 64
          %s471 = scalar_lea.vmem [#allocation2], %s470
          %473 = dma.done %s468, 1024
        $region44: #{tpu_custom_call.1} parent=39 // pred_fallthru
          _
      $region40: #{tpu_custom_call.1} parent=5 // pred_fallthru
        _
    $region6: #{tpu_custom_call.1} parent=1 // loop_footer
      %s16 = sadd.s32 1, %s12
    $region7: #{tpu_custom_call.1} parent=1 // loop_footer_branch
      %11 = sbr.rel target = $region3
    $region8: #{tpu_custom_call.1} parent=1 // loop_exit
      _
    %474 = vsyncpa [#allocation3], 1
    %s475 = scalar_lea.sflag [#allocation3], 1
    %476 = vsyncpa %s475, 1

</llo_original>
